<compile_context>
chip_gen: v7x
topology: tpu7x:2x2x1
jax: 0.10.0
libtpu: 0.0.40
codegen_flags: <defaults>
</compile_context>

<pallas_src>
import functools

import jax
import jax.numpy as jnp
import numpy as np
from jax import lax
from jax.experimental import pallas as pl
from jax.experimental.pallas import tpu as pltpu


def _round_up(x, m):
    return ((x + m - 1) // m) * m


def _linrnn_fused_kernel(
    x_ref,       # (t_blk*Bp, I)    block of time-steps, flattened, I unpadded
    wx_ref,      # (I, 2*Hh)        fused input projection [W_hi^T | dW_hi^T]
    wstate_ref,  # (2*Hh, 2*Hh)     fused state recurrence [[W_hh^T, dW_hh^T],[0, W_hh^T]]
    brec_ref,    # (1, 2*Hh)        fused recurrence bias  [b_hi | db_hi]
    wout_ref,    # (2*Hh, Op)       fused output head [[ (W_yh+dW_yh)^T ],[ W_yh^T ]]
    bout_ref,    # (1, Op)          fused output bias (b_yh + db_yh)
    s0_ref,      # (Bp, 2*Hh)       initial fused state [h0 | dh0], pre-broadcast
    y_ref,       # (Bp, Op)         output, written on the last grid step only
    u_sc,        # VMEM (t_blk*Bp, 2*Hh)  hoisted per-step input projections
    state_sc,    # VMEM (Bp, 2*Hh)        fused state carried across grid blocks
    *,
    t_blk,
    bp,
    seq_len,
    masked,
    unroll,
):
    t = pl.program_id(0)

    @pl.when(t == 0)
    def _():
        state_sc[...] = s0_ref[...]

    # Hoisted input projection + bias for the whole block: one MXU-efficient
    # matmul (M = t_blk*Bp), completely off the sequential critical path.
    wx = wx_ref[...]
    u = jnp.dot(x_ref[...].astype(wx.dtype), wx, preferred_element_type=jnp.float32)
    u_sc[...] = u + brec_ref[...]          # bias folded in ONCE per block

    wstate = wstate_ref[...]
    if masked:
        nv = jnp.minimum(t_blk, seq_len - t * t_blk)  # valid steps in this block

    def step(i, state):
        off = pl.multiple_of(i * bp, 8)
        new = (
            jnp.dot(state.astype(wstate.dtype), wstate,
                    preferred_element_type=jnp.float32)
            + u_sc[pl.ds(off, bp), :]
        )
        if masked:
            new = jnp.where(i < nv, new, state)
        return new

    state = lax.fori_loop(0, t_blk, step, state_sc[...], unroll=unroll)
    state_sc[...] = state

    @pl.when(t == pl.num_programs(0) - 1)
    def _():
        wout = wout_ref[...]
        y = jnp.dot(state.astype(wout.dtype), wout,
                    preferred_element_type=jnp.float32) + bout_ref[...]
        y_ref[...] = y.astype(y_ref.dtype)


def linear_net_forward(x, init_params, self_params, *, t_blk=None,
                       weights_dtype=jnp.float32):
    """x: [seq, batch, input_dim] (time-major).  Returns y: [batch, output_dim]."""
    S, B, I = x.shape
    assert S >= 1, "sequence length must be >= 1"

    f32 = jnp.float32
    W_hi, b_hi, W_hh, W_yh, b_yh, h0 = [jnp.asarray(p, f32) for p in init_params]
    H = W_hi.shape[0]
    O = W_yh.shape[0]

    # Parameter tangents (self - init).
    dW_hi, db_hi, dW_hh, dW_yh, db_yh, dh0 = [
        jnp.asarray(a, f32) - jnp.asarray(b, f32)
        for a, b in zip(self_params, init_params)
    ]

    # ---- padded dims: one 128-lane tile for the fused state when H <= 64 ----
    Bp = _round_up(B, 8)
    Hh = _round_up(H, 64)      # half-state width; 2*Hh is always a multiple of 128
    SW = 2 * Hh                # fused state width [h | dh]
    Op = _round_up(O, 128)

    # ---- time blocking: cdiv grid + (optionally) masked tail block ----
    if t_blk is None:
        t_blk = min(S, 256)
    grid_t = pl.cdiv(S, t_blk)
    S_pad = grid_t * t_blk
    masked = (S_pad != S)
    unroll = True if t_blk <= 32 else 8

    # ---- fused weights / biases (built once, plain XLA) ----
    Wx = (jnp.zeros((I, SW), f32)
          .at[:, :H].set(W_hi.T)
          .at[:, Hh:Hh + H].set(dW_hi.T))
    Wstate = (jnp.zeros((SW, SW), f32)
              .at[:H, :H].set(W_hh.T)
              .at[:H, Hh:Hh + H].set(dW_hh.T)
              .at[Hh:Hh + H, Hh:Hh + H].set(W_hh.T))
    brec = (jnp.zeros((1, SW), f32)
            .at[:, :H].set(b_hi.reshape(1, -1))
            .at[:, Hh:Hh + H].set(db_hi.reshape(1, -1)))
    Wout = (jnp.zeros((SW, Op), f32)
            .at[:H, :O].set((W_yh + dW_yh).T)
            .at[Hh:Hh + H, :O].set(W_yh.T))
    bout = jnp.zeros((1, Op), f32).at[:, :O].set((b_yh + db_yh).reshape(1, -1))
    s0 = (jnp.zeros((Bp, SW), f32)
          .at[:, :H].set(jnp.broadcast_to(h0.reshape(1, -1), (Bp, H)))
          .at[:, Hh:Hh + H].set(jnp.broadcast_to(dh0.reshape(1, -1), (Bp, H))))

    Wx = Wx.astype(weights_dtype)
    Wstate = Wstate.astype(weights_dtype)
    Wout = Wout.astype(weights_dtype)

    # ---- x: batch-padded, time-padded, flattened, LAST DIM UNPADDED ----
    xflat = (jnp.zeros((S_pad, Bp, I), f32)
             .at[:S, :B, :].set(x.astype(f32))
             .reshape(S_pad * Bp, I))

    kernel = functools.partial(
        _linrnn_fused_kernel,
        t_blk=t_blk, bp=Bp, seq_len=S, masked=masked, unroll=unroll,
    )
    # Grid-invariant operands: whole array resident in VMEM, single-buffered.
    vmem_full = pl.BlockSpec(memory_space=pltpu.MemorySpace.VMEM)

    yp = pl.pallas_call(
        kernel,
        out_shape=jax.ShapeDtypeStruct((Bp, Op), f32),
        grid_spec=pltpu.PrefetchScalarGridSpec(
            num_scalar_prefetch=0,
            grid=(grid_t,),
            in_specs=[
                pl.BlockSpec((t_blk * Bp, I), lambda t: (t, 0)),  # streamed x block
                vmem_full,   # Wx
                vmem_full,   # Wstate
                vmem_full,   # brec
                vmem_full,   # Wout
                vmem_full,   # bout
                vmem_full,   # s0
            ],
            out_specs=pl.BlockSpec((Bp, Op), lambda t: (0, 0)),
            scratch_shapes=[
                pltpu.VMEM((t_blk * Bp, SW), f32),   # hoisted input projections
                pltpu.VMEM((Bp, SW), f32),           # carried fused state
            ],
        ),
        compiler_params=pltpu.CompilerParams(
            dimension_semantics=("arbitrary",),      # recurrent over time
        ),
    )(xflat, Wx, Wstate, brec, Wout, bout, s0)

    return yp[:B, :O]


# ----------------------------- pure-JAX reference -----------------------------
def _init_net_ref(params, x):
    W_hi, b_hi, W_hh, W_yh, b_yh, h0 = params
    S, B, _ = x.shape
    h = jnp.broadcast_to(h0.reshape(1, -1), (B, W_hi.shape[0]))
    for t in range(S):
        h = x[t] @ W_hi.T + b_hi.reshape(1, -1) + h @ W_hh.T
    return h @ W_yh.T + b_yh.reshape(1, -1)


def _reference(x, init_params, self_params):
    delta = jax.tree_util.tree_map(lambda a, b: a - b, self_params, init_params)
    y0, dy = jax.jvp(lambda p: _init_net_ref(p, x), (init_params,), (delta,))
    return y0 + dy


if __name__ == "__main__":
    # Small shapes implied by the module: seq=8, batch=4, input_dim=16,
    # hidden_layer_dim=32, output_dim=8.
    S, B, I, H, O = 8, 4, 16, 32, 8

    key = jax.random.PRNGKey(0)
    keys = jax.random.split(key, 14)

    x = jax.random.normal(keys[0], (S, B, I), dtype=jnp.float32)

    # init_net parameters (deterministic).
    init_params = (
        0.1 * jax.random.normal(keys[1], (H, I), dtype=jnp.float32),   # W_hi
        0.1 * jax.random.normal(keys[2], (H,), dtype=jnp.float32),     # b_hi
        0.1 * jax.random.normal(keys[3], (H, H), dtype=jnp.float32),   # W_hh
        0.1 * jax.random.normal(keys[4], (O, H), dtype=jnp.float32),   # W_yh
        0.1 * jax.random.normal(keys[5], (O,), dtype=jnp.float32),     # b_yh
        0.1 * jax.random.normal(keys[6], (1, H), dtype=jnp.float32),   # h0
    )
    # Linear_Net's own parameters (perturbed copies so the tangent path is
    # actually exercised).
    self_params = tuple(
        p + 0.01 * jax.random.normal(k, p.shape, dtype=jnp.float32)
        for p, k in zip(init_params, keys[7:13])
    )

    y = jax.block_until_ready(linear_net_forward(x, init_params, self_params))
    y_ref = _reference(x, init_params, self_params)

    np.testing.assert_allclose(np.asarray(y), np.asarray(y_ref), rtol=1e-4, atol=1e-4)
    print("KERNEL_OK")
</pallas_src>

<mosaic_0001>
module attributes {stable_mosaic.version = 11 : i64} {
  func.func @_linrnn_fused_kernel(%arg0: i32, %arg1: memref<64x16xf32, #tpu.memory_space<vmem>>, %arg2: memref<16x128xf32, #tpu.memory_space<vmem>>, %arg3: memref<128x128xf32, #tpu.memory_space<vmem>>, %arg4: memref<1x128xf32, #tpu.memory_space<vmem>>, %arg5: memref<128x128xf32, #tpu.memory_space<vmem>>, %arg6: memref<1x128xf32, #tpu.memory_space<vmem>>, %arg7: memref<8x128xf32, #tpu.memory_space<vmem>>, %arg8: memref<8x128xf32, #tpu.memory_space<vmem>>, %arg9: memref<64x128xf32, #tpu.memory_space<vmem>>, %arg10: memref<8x128xf32, #tpu.memory_space<vmem>>) attributes {dimension_semantics = [#tpu.dimension_semantics<arbitrary>], iteration_bounds = array<i64: 1>, scalar_prefetch = 0 : i64, scratch_operands = 2 : i64, tpu.core_type = #tpu.core_type<tc>, window_params = [{transform_indices = @transform_0, window_bounds = array<i64: 64, 16>}, {pipeline_mode = #tpu.pipeline_mode<synchronous>, transform_indices = @transform_1, window_bounds = array<i64: 16, 128>}, {pipeline_mode = #tpu.pipeline_mode<synchronous>, transform_indices = @transform_2, window_bounds = array<i64: 128, 128>}, {pipeline_mode = #tpu.pipeline_mode<synchronous>, transform_indices = @transform_3, window_bounds = array<i64: 1, 128>}, {pipeline_mode = #tpu.pipeline_mode<synchronous>, transform_indices = @transform_4, window_bounds = array<i64: 128, 128>}, {pipeline_mode = #tpu.pipeline_mode<synchronous>, transform_indices = @transform_5, window_bounds = array<i64: 1, 128>}, {pipeline_mode = #tpu.pipeline_mode<synchronous>, transform_indices = @transform_6, window_bounds = array<i64: 8, 128>}, {pipeline_mode = #tpu.pipeline_mode<synchronous>, transform_indices = @transform_7, window_bounds = array<i64: 8, 128>}]} {
    %c0_i32 = arith.constant 0 : i32
    %0 = arith.cmpi eq, %arg0, %c0_i32 : i32
    %1 = arith.extui %0 : i1 to i32
    %c0_i32_0 = arith.constant 0 : i32
    %2 = arith.cmpi ne, %1, %c0_i32_0 : i32
    scf.if %2 {
      %c0_41 = arith.constant 0 : index
      %c0_42 = arith.constant 0 : index
      %64 = vector.load %arg7[%c0_41, %c0_42] : memref<8x128xf32, #tpu.memory_space<vmem>>, vector<8x128xf32>
      %c0_43 = arith.constant 0 : index
      %c0_44 = arith.constant 0 : index
      %65 = vector.load %arg10[%c0_43, %c0_44] : memref<8x128xf32, #tpu.memory_space<vmem>>, vector<8x128xf32>
      tpu.vector_store %arg10[%c0_43, %c0_44], %64 {strides = array<i32>} : memref<8x128xf32, #tpu.memory_space<vmem>>, vector<8x128xf32>,
    } else {
    }
    %c0 = arith.constant 0 : index
    %c0_1 = arith.constant 0 : index
    %3 = vector.load %arg2[%c0, %c0_1] : memref<16x128xf32, #tpu.memory_space<vmem>>, vector<16x128xf32>
    %c0_2 = arith.constant 0 : index
    %c0_3 = arith.constant 0 : index
    %4 = vector.load %arg1[%c0_2, %c0_3] : memref<64x16xf32, #tpu.memory_space<vmem>>, vector<64x16xf32>
    %cst = arith.constant dense<0.000000e+00> : vector<64x128xf32>
    %5 = tpu.matmul %4, %3, %cst {dimension_numbers = #tpu.dot_dimension_numbers<[1], [0], [0], [1], [0, 0, 1, 1], [], []>} : vector<64x16xf32>, vector<16x128xf32>, vector<64x128xf32> -> vector<64x128xf32>
    %c0_4 = arith.constant 0 : index
    %c0_5 = arith.constant 0 : index
    %6 = vector.load %arg4[%c0_4, %c0_5] : memref<1x128xf32, #tpu.memory_space<vmem>>, vector<1x128xf32>
    %7 = vector.broadcast %6 : vector<1x128xf32> to vector<64x128xf32>
    %8 = arith.addf %5, %7 : vector<64x128xf32>
    %c0_6 = arith.constant 0 : index
    %c0_7 = arith.constant 0 : index
    %9 = vector.load %arg9[%c0_6, %c0_7] : memref<64x128xf32, #tpu.memory_space<vmem>>, vector<64x128xf32>
    tpu.vector_store %arg9[%c0_6, %c0_7], %8 {strides = array<i32>} : memref<64x128xf32, #tpu.memory_space<vmem>>, vector<64x128xf32>,
    %c0_8 = arith.constant 0 : index
    %c0_9 = arith.constant 0 : index
    %10 = vector.load %arg3[%c0_8, %c0_9] : memref<128x128xf32, #tpu.memory_space<vmem>>, vector<128x128xf32>
    %c0_10 = arith.constant 0 : index
    %c0_11 = arith.constant 0 : index
    %11 = vector.load %arg10[%c0_10, %c0_11] : memref<8x128xf32, #tpu.memory_space<vmem>>, vector<8x128xf32>
    %c0_i32_12 = arith.constant 0 : i32
    %c8_i32 = arith.constant 8 : i32
    %12 = arith.muli %c0_i32_12, %c8_i32 : i32
    %13 = tpu.assume_multiple %12, 8 : i32
    %cst_13 = arith.constant dense<0.000000e+00> : vector<8x128xf32>
    %14 = tpu.matmul %11, %10, %cst_13 {dimension_numbers = #tpu.dot_dimension_numbers<[1], [0], [0], [1], [0, 0, 1, 1], [], []>} : vector<8x128xf32>, vector<128x128xf32>, vector<8x128xf32> -> vector<8x128xf32>
    %15 = arith.index_cast %13 : i32 to index
    %c0_14 = arith.constant 0 : index
    %16 = vector.load %arg9[%15, %c0_14] : memref<64x128xf32, #tpu.memory_space<vmem>>, vector<8x128xf32>
    %17 = arith.addf %14, %16 : vector<8x128xf32>
    %c1_i32 = arith.constant 1 : i32
    %c8_i32_15 = arith.constant 8 : i32
    %18 = arith.muli %c1_i32, %c8_i32_15 : i32
    %19 = tpu.assume_multiple %18, 8 : i32
    %cst_16 = arith.constant dense<0.000000e+00> : vector<8x128xf32>
    %20 = tpu.matmul %17, %10, %cst_16 {dimension_numbers = #tpu.dot_dimension_numbers<[1], [0], [0], [1], [0, 0, 1, 1], [], []>} : vector<8x128xf32>, vector<128x128xf32>, vector<8x128xf32> -> vector<8x128xf32>
    %21 = arith.index_cast %19 : i32 to index
    %c0_17 = arith.constant 0 : index
    %22 = vector.load %arg9[%21, %c0_17] : memref<64x128xf32, #tpu.memory_space<vmem>>, vector<8x128xf32>
    %23 = arith.addf %20, %22 : vector<8x128xf32>
    %c2_i32 = arith.constant 2 : i32
    %c8_i32_18 = arith.constant 8 : i32
    %24 = arith.muli %c2_i32, %c8_i32_18 : i32
    %25 = tpu.assume_multiple %24, 8 : i32
    %cst_19 = arith.constant dense<0.000000e+00> : vector<8x128xf32>
    %26 = tpu.matmul %23, %10, %cst_19 {dimension_numbers = #tpu.dot_dimension_numbers<[1], [0], [0], [1], [0, 0, 1, 1], [], []>} : vector<8x128xf32>, vector<128x128xf32>, vector<8x128xf32> -> vector<8x128xf32>
    %27 = arith.index_cast %25 : i32 to index
    %c0_20 = arith.constant 0 : index
    %28 = vector.load %arg9[%27, %c0_20] : memref<64x128xf32, #tpu.memory_space<vmem>>, vector<8x128xf32>
    %29 = arith.addf %26, %28 : vector<8x128xf32>
    %c3_i32 = arith.constant 3 : i32
    %c8_i32_21 = arith.constant 8 : i32
    %30 = arith.muli %c3_i32, %c8_i32_21 : i32
    %31 = tpu.assume_multiple %30, 8 : i32
    %cst_22 = arith.constant dense<0.000000e+00> : vector<8x128xf32>
    %32 = tpu.matmul %29, %10, %cst_22 {dimension_numbers = #tpu.dot_dimension_numbers<[1], [0], [0], [1], [0, 0, 1, 1], [], []>} : vector<8x128xf32>, vector<128x128xf32>, vector<8x128xf32> -> vector<8x128xf32>
    %33 = arith.index_cast %31 : i32 to index
    %c0_23 = arith.constant 0 : index
    %34 = vector.load %arg9[%33, %c0_23] : memref<64x128xf32, #tpu.memory_space<vmem>>, vector<8x128xf32>
    %35 = arith.addf %32, %34 : vector<8x128xf32>
    %c4_i32 = arith.constant 4 : i32
    %c8_i32_24 = arith.constant 8 : i32
    %36 = arith.muli %c4_i32, %c8_i32_24 : i32
    %37 = tpu.assume_multiple %36, 8 : i32
    %cst_25 = arith.constant dense<0.000000e+00> : vector<8x128xf32>
    %38 = tpu.matmul %35, %10, %cst_25 {dimension_numbers = #tpu.dot_dimension_numbers<[1], [0], [0], [1], [0, 0, 1, 1], [], []>} : vector<8x128xf32>, vector<128x128xf32>, vector<8x128xf32> -> vector<8x128xf32>
    %39 = arith.index_cast %37 : i32 to index
    %c0_26 = arith.constant 0 : index
    %40 = vector.load %arg9[%39, %c0_26] : memref<64x128xf32, #tpu.memory_space<vmem>>, vector<8x128xf32>
    %41 = arith.addf %38, %40 : vector<8x128xf32>
    %c5_i32 = arith.constant 5 : i32
    %c8_i32_27 = arith.constant 8 : i32
    %42 = arith.muli %c5_i32, %c8_i32_27 : i32
    %43 = tpu.assume_multiple %42, 8 : i32
    %cst_28 = arith.constant dense<0.000000e+00> : vector<8x128xf32>
    %44 = tpu.matmul %41, %10, %cst_28 {dimension_numbers = #tpu.dot_dimension_numbers<[1], [0], [0], [1], [0, 0, 1, 1], [], []>} : vector<8x128xf32>, vector<128x128xf32>, vector<8x128xf32> -> vector<8x128xf32>
    %45 = arith.index_cast %43 : i32 to index
    %c0_29 = arith.constant 0 : index
    %46 = vector.load %arg9[%45, %c0_29] : memref<64x128xf32, #tpu.memory_space<vmem>>, vector<8x128xf32>
    %47 = arith.addf %44, %46 : vector<8x128xf32>
    %c6_i32 = arith.constant 6 : i32
    %c8_i32_30 = arith.constant 8 : i32
    %48 = arith.muli %c6_i32, %c8_i32_30 : i32
    %49 = tpu.assume_multiple %48, 8 : i32
    %cst_31 = arith.constant dense<0.000000e+00> : vector<8x128xf32>
    %50 = tpu.matmul %47, %10, %cst_31 {dimension_numbers = #tpu.dot_dimension_numbers<[1], [0], [0], [1], [0, 0, 1, 1], [], []>} : vector<8x128xf32>, vector<128x128xf32>, vector<8x128xf32> -> vector<8x128xf32>
    %51 = arith.index_cast %49 : i32 to index
    %c0_32 = arith.constant 0 : index
    %52 = vector.load %arg9[%51, %c0_32] : memref<64x128xf32, #tpu.memory_space<vmem>>, vector<8x128xf32>
    %53 = arith.addf %50, %52 : vector<8x128xf32>
    %c7_i32 = arith.constant 7 : i32
    %c8_i32_33 = arith.constant 8 : i32
    %54 = arith.muli %c7_i32, %c8_i32_33 : i32
    %55 = tpu.assume_multiple %54, 8 : i32
    %cst_34 = arith.constant dense<0.000000e+00> : vector<8x128xf32>
    %56 = tpu.matmul %53, %10, %cst_34 {dimension_numbers = #tpu.dot_dimension_numbers<[1], [0], [0], [1], [0, 0, 1, 1], [], []>} : vector<8x128xf32>, vector<128x128xf32>, vector<8x128xf32> -> vector<8x128xf32>
    %57 = arith.index_cast %55 : i32 to index
    %c0_35 = arith.constant 0 : index
    %58 = vector.load %arg9[%57, %c0_35] : memref<64x128xf32, #tpu.memory_space<vmem>>, vector<8x128xf32>
    %59 = arith.addf %56, %58 : vector<8x128xf32>
    %c8_i32_36 = arith.constant 8 : i32
    %c0_37 = arith.constant 0 : index
    %c0_38 = arith.constant 0 : index
    %60 = vector.load %arg10[%c0_37, %c0_38] : memref<8x128xf32, #tpu.memory_space<vmem>>, vector<8x128xf32>
    tpu.vector_store %arg10[%c0_37, %c0_38], %59 {strides = array<i32>} : memref<8x128xf32, #tpu.memory_space<vmem>>, vector<8x128xf32>,
    %c0_i32_39 = arith.constant 0 : i32
    %61 = arith.cmpi eq, %arg0, %c0_i32_39 : i32
    %62 = arith.extui %61 : i1 to i32
    %c0_i32_40 = arith.constant 0 : i32
    %63 = arith.cmpi ne, %62, %c0_i32_40 : i32
    scf.if %63 {
      %c0_41 = arith.constant 0 : index
      %c0_42 = arith.constant 0 : index
      %64 = vector.load %arg5[%c0_41, %c0_42] : memref<128x128xf32, #tpu.memory_space<vmem>>, vector<128x128xf32>
      %cst_43 = arith.constant dense<0.000000e+00> : vector<8x128xf32>
      %65 = tpu.matmul %59, %64, %cst_43 {dimension_numbers = #tpu.dot_dimension_numbers<[1], [0], [0], [1], [0, 0, 1, 1], [], []>} : vector<8x128xf32>, vector<128x128xf32>, vector<8x128xf32> -> vector<8x128xf32>
      %c0_44 = arith.constant 0 : index
      %c0_45 = arith.constant 0 : index
      %66 = vector.load %arg6[%c0_44, %c0_45] : memref<1x128xf32, #tpu.memory_space<vmem>>, vector<1x128xf32>
      %67 = vector.broadcast %66 : vector<1x128xf32> to vector<8x128xf32>
      %68 = arith.addf %65, %67 : vector<8x128xf32>
      %c0_46 = arith.constant 0 : index
      %c0_47 = arith.constant 0 : index
      %69 = vector.load %arg8[%c0_46, %c0_47] : memref<8x128xf32, #tpu.memory_space<vmem>>, vector<8x128xf32>
      tpu.vector_store %arg8[%c0_46, %c0_47], %68 {strides = array<i32>} : memref<8x128xf32, #tpu.memory_space<vmem>>, vector<8x128xf32>,
    } else {
    }
    return
  }
  func.func @transform_0(%arg0: i32) -> (i32, i32) {
    %c0_i32 = arith.constant 0 : i32
    %c0_i32_0 = arith.constant 0 : i32
    return %arg0, %c0_i32 : i32, i32
  }
  func.func @transform_1(%arg0: i32) -> (i32, i32) {
    %c0_i32 = arith.constant 0 : i32
    %c0_i32_0 = arith.constant 0 : i32
    %c0_i32_1 = arith.constant 0 : i32
    return %c0_i32, %c0_i32_0 : i32, i32
  }
  func.func @transform_2(%arg0: i32) -> (i32, i32) {
    %c0_i32 = arith.constant 0 : i32
    %c0_i32_0 = arith.constant 0 : i32
    %c0_i32_1 = arith.constant 0 : i32
    return %c0_i32, %c0_i32_0 : i32, i32
  }
  func.func @transform_3(%arg0: i32) -> (i32, i32) {
    %c0_i32 = arith.constant 0 : i32
    %c0_i32_0 = arith.constant 0 : i32
    %c0_i32_1 = arith.constant 0 : i32
    return %c0_i32, %c0_i32_0 : i32, i32
  }
  func.func @transform_4(%arg0: i32) -> (i32, i32) {
    %c0_i32 = arith.constant 0 : i32
    %c0_i32_0 = arith.constant 0 : i32
    %c0_i32_1 = arith.constant 0 : i32
    return %c0_i32, %c0_i32_0 : i32, i32
  }
  func.func @transform_5(%arg0: i32) -> (i32, i32) {
    %c0_i32 = arith.constant 0 : i32
    %c0_i32_0 = arith.constant 0 : i32
    %c0_i32_1 = arith.constant 0 : i32
    return %c0_i32, %c0_i32_0 : i32, i32
  }
  func.func @transform_6(%arg0: i32) -> (i32, i32) {
    %c0_i32 = arith.constant 0 : i32
    %c0_i32_0 = arith.constant 0 : i32
    %c0_i32_1 = arith.constant 0 : i32
    return %c0_i32, %c0_i32_0 : i32, i32
  }
  func.func @transform_7(%arg0: i32) -> (i32, i32) {
    %c0_i32 = arith.constant 0 : i32
    %c0_i32_0 = arith.constant 0 : i32
    %c0_i32_1 = arith.constant 0 : i32
    return %c0_i32, %c0_i32_0 : i32, i32
  }
}

</mosaic_0001>

<llo_original>
// kernel: tpu_custom_call.1
$region0: #{tpu_custom_call.1}
  #allocation0 [shape = 'u32[]', space=smem, size = 0x4, offset = 0x4, fixed_abs, tag = 'smem constant byte address 0x4 - core index']
  #allocation1 [shape = 'u32[144,128]{1,0:T(1,128)}', space=vmem, size = 0x12000, scoped, tag = 'internal scratch']
  #allocation2 [shape = 'f32[64,128]{1,0:T(8,128)}', space=vmem, size = 0x8000, scoped, tag = 'scratch operand']
  #allocation3 [shape = 'f32[8,128]{1,0:T(8,128)}', space=vmem, size = 0x1000, scoped, tag = 'scratch operand']
  %s0 = inlined_call_operand.vmem [shape: f32[64,16], index: 0, kind: input, shape index: {}]
  %s1 = inlined_call_operand.vmem [shape: f32[16,128], index: 1, kind: input, shape index: {}]
  %s2 = inlined_call_operand.hbm [shape: f32[128,128], index: 2, kind: input, shape index: {}]
  %s3 = inlined_call_operand.vmem [shape: f32[1,128], index: 3, kind: input, shape index: {}]
  %s4 = inlined_call_operand.hbm [shape: f32[128,128], index: 4, kind: input, shape index: {}]
  %s5 = inlined_call_operand.vmem [shape: f32[1,128], index: 5, kind: input, shape index: {}]
  %s6 = inlined_call_operand.vmem [shape: f32[8,128], index: 6, kind: input, shape index: {}]
  %s7 = inlined_call_operand.hbm [shape: f32[8,128], index: 7, kind: output, shape index: {}]
  %s8 = sld [smem:[#allocation0]]
  $region54: #{tpu_custom_call.1} parent=0
    _
  %s10 = ssub.s32 1, %s8
  %s11 = scalar_select 0, %s10, %s8
  $region1: #{tpu_custom_call.1} parent=0
    #allocation4 [shape = 'u8[65536]{0}', space=vmem, size = 0x10000, scoped, tag = 'input window, operand 2, single buffered']
    #allocation5 [shape = 's32[1]{0}', space=sflag, size = 0x4, scoped, tag = 'scoped memory for tpu_custom_call.1']
    #allocation6 [shape = 's32[1]{0}', space=sflag, size = 0x4, scoped, tag = 'scoped memory for tpu_custom_call.1']
    #allocation7 [shape = 'u8[65536]{0}', space=vmem, size = 0x10000, scoped, tag = 'input window, operand 4, single buffered']
    #allocation8 [shape = 's32[1]{0}', space=sflag, size = 0x4, scoped, tag = 'scoped memory for tpu_custom_call.1']
    #allocation9 [shape = 'u8[4096]{0}', space=vmem, size = 0x1000, scoped, tag = 'output window, operand 0, single buffered']
    %12 = vsyncpa [#allocation5], 0
    %13 = vsyncpa [#allocation8], 0
    %14 = vsyncpa [#allocation6], 0
    // Predicated region
    $region2: #{tpu_custom_call.1} parent=1 // pred_check
      _
    $region3: #{tpu_custom_call.1} parent=1 // pred_check_branch
      %16 = sbr.rel (0) target = $region5
    $region4: #{tpu_custom_call.1} parent=1 // pred_region
      _
    $region5: #{tpu_custom_call.1} parent=1 // pred_fallthru
      _
    // Predicated region
    $region6: #{tpu_custom_call.1} parent=1 // pred_check
      _
    $region7: #{tpu_custom_call.1} parent=1 // pred_check_branch
      %18 = sbr.rel (0) target = $region9
    $region8: #{tpu_custom_call.1} parent=1 // pred_region
      _
    $region9: #{tpu_custom_call.1} parent=1 // pred_fallthru
      _
    // Predicated region
    $region10: #{tpu_custom_call.1} parent=1 // pred_check
      _
    $region11: #{tpu_custom_call.1} parent=1 // pred_check_branch
      %20 = sbr.rel (0) target = $region13
    $region12: #{tpu_custom_call.1} parent=1 // pred_region
      %s22 = ssub.s32 2048, 2048
      %23 = vsyncadd [#allocation5], %s22
      %s24 = sshll.u32 [#allocation4], 4
      %s25 = int_to_ptr.vmem [resolvable:$true] %s24
      %30 = dma.hbm_to_vmem [thread:$0]  %s2, 2048, %s25, [#allocation5], 128, 128, 8
    $region13: #{tpu_custom_call.1} parent=1 // pred_fallthru
      _
    // Predicated region
    $region14: #{tpu_custom_call.1} parent=1 // pred_check
      _
    $region15: #{tpu_custom_call.1} parent=1 // pred_check_branch
      %32 = sbr.rel (0) target = $region17
    $region16: #{tpu_custom_call.1} parent=1 // pred_region
      _
    $region17: #{tpu_custom_call.1} parent=1 // pred_fallthru
      _
    // Predicated region
    $region18: #{tpu_custom_call.1} parent=1 // pred_check
      _
    $region19: #{tpu_custom_call.1} parent=1 // pred_check_branch
      %34 = sbr.rel (0) target = $region21
    $region20: #{tpu_custom_call.1} parent=1 // pred_region
      %s36 = ssub.s32 2048, 2048
      %37 = vsyncadd [#allocation8], %s36
      %s38 = sshll.u32 [#allocation7], 4
      %s39 = int_to_ptr.vmem [resolvable:$true] %s38
      %44 = dma.hbm_to_vmem [thread:$0]  %s4, 2048, %s39, [#allocation8], 128, 128, 8
    $region21: #{tpu_custom_call.1} parent=1 // pred_fallthru
      _
    // Predicated region
    $region22: #{tpu_custom_call.1} parent=1 // pred_check
      _
    $region23: #{tpu_custom_call.1} parent=1 // pred_check_branch
      %46 = sbr.rel (0) target = $region25
    $region24: #{tpu_custom_call.1} parent=1 // pred_region
      _
    $region25: #{tpu_custom_call.1} parent=1 // pred_fallthru
      _
    // Predicated region
    $region26: #{tpu_custom_call.1} parent=1 // pred_check
      _
    $region27: #{tpu_custom_call.1} parent=1 // pred_check_branch
      %48 = sbr.rel (0) target = $region29
    $region28: #{tpu_custom_call.1} parent=1 // pred_region
      _
    $region29: #{tpu_custom_call.1} parent=1 // pred_fallthru
      _
    // Predicated region
    $region30: #{tpu_custom_call.1} parent=1 // pred_check
      _
    $region31: #{tpu_custom_call.1} parent=1 // pred_check_branch
      %50 = sbr.rel (0) target = $region33
    $region32: #{tpu_custom_call.1} parent=1 // pred_region
      %51 = dma.done [#allocation5], 2048
    $region33: #{tpu_custom_call.1} parent=1 // pred_fallthru
      _
    // Predicated region
    $region34: #{tpu_custom_call.1} parent=1 // pred_check
      _
    $region35: #{tpu_custom_call.1} parent=1 // pred_check_branch
      %53 = sbr.rel (0) target = $region37
    $region36: #{tpu_custom_call.1} parent=1 // pred_region
      %54 = dma.done [#allocation8], 2048
    $region37: #{tpu_custom_call.1} parent=1 // pred_fallthru
      _
    %p55 = scmp.eq.s32.totalorder 0, 0
    // Predicated region
    $region38: #{tpu_custom_call.1} parent=1 // pred_check
      %p56 = pneg %p55
    $region39: #{tpu_custom_call.1} parent=1 // pred_check_branch
      %58 = sbr.rel (%p56) target = $region41
    $region40: #{tpu_custom_call.1} parent=1 // pred_region
      %v59 = vld [vmem:[%s6] sm:$0xff]
      %60 = vst [vmem:[#allocation3] sm:$0xff] %v59
    $region41: #{tpu_custom_call.1} parent=1 // pred_fallthru
      _
    %v61 = vld [vmem:[%s1] sm:$0xff]
    %v62 = vld [vmem:[%s1 + $0x8] sm:$0xff]
    %v63 = vld [vmem:[%s0] sm:$0xff]
    %v64 = vld [vmem:[%s0 + $0x8] sm:$0xff]
    %v65 = vld [vmem:[%s0 + $0x10] sm:$0xff]
    %v66 = vld [vmem:[%s0 + $0x18] sm:$0xff]
    %v67 = vld [vmem:[%s0 + $0x20] sm:$0xff]
    %v68 = vld [vmem:[%s0 + $0x28] sm:$0xff]
    %v69 = vld [vmem:[%s0 + $0x30] sm:$0xff]
    %v70 = vld [vmem:[%s0 + $0x38] sm:$0xff]
    %v71 = vld [vmem:[%s3] sm:$0x1]
    %v73 = vlaneseq
    %v74 = vshrl.u32 %v73, 7
    %v75 = vsub.s32 0, %v74
    %v76 = vrot.slane %v71, %v75
    %vm78 = vcmask 130048
    %v80 = vsel %vm78, %v63, 0
    %v83 = vsel %vm78, %v64, 0
    %v86 = vsel %vm78, %v65, 0
    %v89 = vsel %vm78, %v66, 0
    %v92 = vsel %vm78, %v67, 0
    %v95 = vsel %vm78, %v68, 0
    %v98 = vsel %vm78, %v69, 0
    %v101 = vsel %vm78, %v70, 0
    %103 = vmatprep.subr.mxu0 0.0
    %104 = vmatpush1.msra.mxu0 %v61
    %105 = vmatprep.subr.mxu0 0.0
    %106 = vmatpush1.msra.mxu0 %v62
    %107 = vmatprep.subr.mxu0 0.0
    %108 = vmatpush1.msra.mxu0 0.0
    %109 = vmatprep.subr.mxu0 0.0
    %110 = vmatpush1.msra.mxu0 0.0
    %111 = vmatprep.subr.mxu0 0.0
    %112 = vmatpush1.msra.mxu0 0.0
    %113 = vmatprep.subr.mxu0 0.0
    %114 = vmatpush1.msra.mxu0 0.0
    %115 = vmatprep.subr.mxu0 0.0
    %116 = vmatpush1.msra.mxu0 0.0
    %117 = vmatprep.subr.mxu0 0.0
    %118 = vmatpush1.msra.mxu0 0.0
    %119 = vmatprep.subr.mxu0 0.0
    %120 = vmatpush1.msra.mxu0 0.0
    %121 = vmatprep.subr.mxu0 0.0
    %122 = vmatpush1.msra.mxu0 0.0
    %123 = vmatprep.subr.mxu0 0.0
    %124 = vmatpush1.msra.mxu0 0.0
    %125 = vmatprep.subr.mxu0 0.0
    %126 = vmatpush1.msra.mxu0 0.0
    %127 = vmatprep.subr.mxu0 0.0
    %128 = vmatpush1.msra.mxu0 0.0
    %129 = vmatprep.subr.mxu0 0.0
    %130 = vmatpush1.msra.mxu0 0.0
    %131 = vmatprep.subr.mxu0 0.0
    %132 = vmatpush1.msra.mxu0 0.0
    %133 = vmatprep.subr.mxu0 0.0
    %134 = vmatpush1.msra.mxu0 0.0
    %135 = vmatprep.subr.mxu0 0.0
    %136 = vmatpush1.msra.mxu0 0.0
    %137 = vmatprep.subr.mxu0 0.0
    %138 = vmatpush1.msra.mxu0 0.0
    %139 = vmatprep.subr.mxu0 0.0
    %140 = vmatpush1.msra.mxu0 0.0
    %141 = vmatprep.subr.mxu0 0.0
    %142 = vmatpush1.msra.mxu0 0.0
    %143 = vmatprep.subr.mxu0 0.0
    %144 = vmatpush1.msra.mxu0 0.0
    %145 = vmatprep.subr.mxu0 0.0
    %146 = vmatpush1.msra.mxu0 0.0
    %147 = vmatprep.subr.mxu0 0.0
    %148 = vmatpush1.msra.mxu0 0.0
    %149 = vmatprep.subr.mxu0 0.0
    %150 = vmatpush1.msra.mxu0 0.0
    %151 = vmatprep.subr.mxu0 0.0
    %152 = vmatpush1.msra.mxu0 0.0
    %153 = vmatprep.subr.mxu0 0.0
    %154 = vmatpush1.msra.mxu0 0.0
    %155 = vmatprep.subr.mxu0 0.0
    %156 = vmatpush1.msra.mxu0 0.0
    %157 = vmatprep.subr.mxu0 0.0
    %158 = vmatpush1.msra.mxu0 0.0
    %159 = vmatprep.subr.mxu0 0.0
    %160 = vmatpush1.msra.mxu0 0.0
    %161 = vmatprep.subr.mxu0 0.0
    %162 = vmatpush1.msra.mxu0 0.0
    %163 = vmatprep.subr.mxu0 0.0
    %164 = vmatpush1.msra.mxu0 0.0
    %165 = vmatprep.subr.mxu0 0.0
    %166 = vmatpush1.msra.mxu0 0.0
    %167 = vmatprep.mubr.f32.mxu0 0.0
    %168 = vmatmul.mubr.f32.gmra.mrb[0].mxu0 %v80
    %v169 = vpop.f32.mrb[0].mxu0
    %v170 = vadd.f32 %v76, %v169
    %v171 = vpop.f32.mrb[0].mxu0
    %172 = vmatprep.mubr.f32.mxu0 0.0
    %173 = vmatmul.mubr.f32.gmra.mrb[0].mxu0 %v83
    %v174 = vpop.f32.mrb[0].mxu0
    %v175 = vadd.f32 %v76, %v174
    %v176 = vpop.f32.mrb[0].mxu0
    %177 = vmatprep.mubr.f32.mxu0 0.0
    %178 = vmatmul.mubr.f32.gmra.mrb[0].mxu0 %v86
    %v179 = vpop.f32.mrb[0].mxu0
    %v180 = vadd.f32 %v76, %v179
    %v181 = vpop.f32.mrb[0].mxu0
    %182 = vmatprep.mubr.f32.mxu0 0.0
    %183 = vmatmul.mubr.f32.gmra.mrb[0].mxu0 %v89
    %v184 = vpop.f32.mrb[0].mxu0
    %v185 = vadd.f32 %v76, %v184
    %v186 = vpop.f32.mrb[0].mxu0
    %187 = vmatprep.mubr.f32.mxu0 0.0
    %188 = vmatmul.mubr.f32.gmra.mrb[0].mxu0 %v92
    %v189 = vpop.f32.mrb[0].mxu0
    %v190 = vadd.f32 %v76, %v189
    %v191 = vpop.f32.mrb[0].mxu0
    %192 = vmatprep.mubr.f32.mxu0 0.0
    %193 = vmatmul.mubr.f32.gmra.mrb[0].mxu0 %v95
    %v194 = vpop.f32.mrb[0].mxu0
    %v195 = vadd.f32 %v76, %v194
    %v196 = vpop.f32.mrb[0].mxu0
    %197 = vmatprep.mubr.f32.mxu0 0.0
    %198 = vmatmul.mubr.f32.gmra.mrb[0].mxu0 %v98
    %v199 = vpop.f32.mrb[0].mxu0
    %v200 = vadd.f32 %v76, %v199
    %v201 = vpop.f32.mrb[0].mxu0
    %202 = vmatprep.mubr.f32.mxu0 0.0
    %203 = vmatmul.mubr.f32.gmra.mrb[0].mxu0 %v101
    %v204 = vpop.f32.mrb[0].mxu0
    %v205 = vadd.f32 %v76, %v204
    %v206 = vpop.f32.mrb[0].mxu0
    %207 = vdwg.mxu0
    %208 = vst [vmem:[#allocation2] sm:$0xff] %v170
    %209 = vst [vmem:[#allocation2 + $0x8] sm:$0xff] %v175
    %210 = vst [vmem:[#allocation2 + $0x10] sm:$0xff] %v180
    %211 = vst [vmem:[#allocation2 + $0x18] sm:$0xff] %v185
    %212 = vst [vmem:[#allocation2 + $0x20] sm:$0xff] %v190
    %213 = vst [vmem:[#allocation2 + $0x28] sm:$0xff] %v195
    %214 = vst [vmem:[#allocation2 + $0x30] sm:$0xff] %v200
    %215 = vst [vmem:[#allocation2 + $0x38] sm:$0xff] %v205
    %v216 = vld [vmem:[#allocation4] sm:$0xff]
    %v217 = vld [vmem:[#allocation4 + $0x8] sm:$0xff]
    %v218 = vld [vmem:[#allocation4 + $0x10] sm:$0xff]
    %v219 = vld [vmem:[#allocation4 + $0x18] sm:$0xff]
    %v220 = vld [vmem:[#allocation4 + $0x20] sm:$0xff]
    %v221 = vld [vmem:[#allocation4 + $0x28] sm:$0xff]
    %v222 = vld [vmem:[#allocation4 + $0x30] sm:$0xff]
    %v223 = vld [vmem:[#allocation4 + $0x38] sm:$0xff]
    %v224 = vld [vmem:[#allocation4 + $0x40] sm:$0xff]
    %v225 = vld [vmem:[#allocation4 + $0x48] sm:$0xff]
    %v226 = vld [vmem:[#allocation4 + $0x50] sm:$0xff]
    %v227 = vld [vmem:[#allocation4 + $0x58] sm:$0xff]
    %v228 = vld [vmem:[#allocation4 + $0x60] sm:$0xff]
    %v229 = vld [vmem:[#allocation4 + $0x68] sm:$0xff]
    %v230 = vld [vmem:[#allocation4 + $0x70] sm:$0xff]
    %v231 = vld [vmem:[#allocation4 + $0x78] sm:$0xff]
    %v232 = vld [vmem:[#allocation3] sm:$0xff]
    %v233 = vld [vmem:[#allocation2] sm:$0xff]
    %234 = vmatprep.subr.mxu0 0.0
    %235 = vmatpush1.msra.mxu0 %v216
    %236 = vmatprep.subr.mxu0 0.0
    %237 = vmatpush1.msra.mxu0 %v217
    %238 = vmatprep.subr.mxu0 0.0
    %239 = vmatpush1.msra.mxu0 %v218
    %240 = vmatprep.subr.mxu0 0.0
    %241 = vmatpush1.msra.mxu0 %v219
    %242 = vmatprep.subr.mxu0 0.0
    %243 = vmatpush1.msra.mxu0 %v220
    %244 = vmatprep.subr.mxu0 0.0
    %245 = vmatpush1.msra.mxu0 %v221
    %246 = vmatprep.subr.mxu0 0.0
    %247 = vmatpush1.msra.mxu0 %v222
    %248 = vmatprep.subr.mxu0 0.0
    %249 = vmatpush1.msra.mxu0 %v223
    %250 = vmatprep.subr.mxu0 0.0
    %251 = vmatpush1.msra.mxu0 %v224
    %252 = vmatprep.subr.mxu0 0.0
    %253 = vmatpush1.msra.mxu0 %v225
    %254 = vmatprep.subr.mxu0 0.0
    %255 = vmatpush1.msra.mxu0 %v226
    %256 = vmatprep.subr.mxu0 0.0
    %257 = vmatpush1.msra.mxu0 %v227
    %258 = vmatprep.subr.mxu0 0.0
    %259 = vmatpush1.msra.mxu0 %v228
    %260 = vmatprep.subr.mxu0 0.0
    %261 = vmatpush1.msra.mxu0 %v229
    %262 = vmatprep.subr.mxu0 0.0
    %263 = vmatpush1.msra.mxu0 %v230
    %264 = vmatprep.subr.mxu0 0.0
    %265 = vmatpush1.msra.mxu0 %v231
    %266 = vmatprep.subr.mxu0 0.0
    %267 = vmatpush1.msra.mxu0 0.0
    %268 = vmatprep.subr.mxu0 0.0
    %269 = vmatpush1.msra.mxu0 0.0
    %270 = vmatprep.subr.mxu0 0.0
    %271 = vmatpush1.msra.mxu0 0.0
    %272 = vmatprep.subr.mxu0 0.0
    %273 = vmatpush1.msra.mxu0 0.0
    %274 = vmatprep.subr.mxu0 0.0
    %275 = vmatpush1.msra.mxu0 0.0
    %276 = vmatprep.subr.mxu0 0.0
    %277 = vmatpush1.msra.mxu0 0.0
    %278 = vmatprep.subr.mxu0 0.0
    %279 = vmatpush1.msra.mxu0 0.0
    %280 = vmatprep.subr.mxu0 0.0
    %281 = vmatpush1.msra.mxu0 0.0
    %282 = vmatprep.subr.mxu0 0.0
    %283 = vmatpush1.msra.mxu0 0.0
    %284 = vmatprep.subr.mxu0 0.0
    %285 = vmatpush1.msra.mxu0 0.0
    %286 = vmatprep.subr.mxu0 0.0
    %287 = vmatpush1.msra.mxu0 0.0
    %288 = vmatprep.subr.mxu0 0.0
    %289 = vmatpush1.msra.mxu0 0.0
    %290 = vmatprep.subr.mxu0 0.0
    %291 = vmatpush1.msra.mxu0 0.0
    %292 = vmatprep.subr.mxu0 0.0
    %293 = vmatpush1.msra.mxu0 0.0
    %294 = vmatprep.subr.mxu0 0.0
    %295 = vmatpush1.msra.mxu0 0.0
    %296 = vmatprep.subr.mxu0 0.0
    %297 = vmatpush1.msra.mxu0 0.0
    %298 = vmatprep.mubr.f32.mxu0 0.0
    %299 = vmatmul.mubr.f32.gmra.mrb[0].mxu0 %v232
    %v300 = vpop.f32.mrb[0].mxu0
    %v301 = vadd.f32 %v233, %v300
    %v302 = vpop.f32.mrb[0].mxu0
    %303 = vdwg.mxu0
    %s304 = scalar_lea.vmem [#allocation2], 8
    %v305 = vld [vmem:[%s304] sm:$0xff]
    %306 = vmatprep.subr.mxu0 0.0
    %307 = vmatpush1.msra.mxu0 %v216
    %308 = vmatprep.subr.mxu0 0.0
    %309 = vmatpush1.msra.mxu0 %v217
    %310 = vmatprep.subr.mxu0 0.0
    %311 = vmatpush1.msra.mxu0 %v218
    %312 = vmatprep.subr.mxu0 0.0
    %313 = vmatpush1.msra.mxu0 %v219
    %314 = vmatprep.subr.mxu0 0.0
    %315 = vmatpush1.msra.mxu0 %v220
    %316 = vmatprep.subr.mxu0 0.0
    %317 = vmatpush1.msra.mxu0 %v221
    %318 = vmatprep.subr.mxu0 0.0
    %319 = vmatpush1.msra.mxu0 %v222
    %320 = vmatprep.subr.mxu0 0.0
    %321 = vmatpush1.msra.mxu0 %v223
    %322 = vmatprep.subr.mxu0 0.0
    %323 = vmatpush1.msra.mxu0 %v224
    %324 = vmatprep.subr.mxu0 0.0
    %325 = vmatpush1.msra.mxu0 %v225
    %326 = vmatprep.subr.mxu0 0.0
    %327 = vmatpush1.msra.mxu0 %v226
    %328 = vmatprep.subr.mxu0 0.0
    %329 = vmatpush1.msra.mxu0 %v227
    %330 = vmatprep.subr.mxu0 0.0
    %331 = vmatpush1.msra.mxu0 %v228
    %332 = vmatprep.subr.mxu0 0.0
    %333 = vmatpush1.msra.mxu0 %v229
    %334 = vmatprep.subr.mxu0 0.0
    %335 = vmatpush1.msra.mxu0 %v230
    %336 = vmatprep.subr.mxu0 0.0
    %337 = vmatpush1.msra.mxu0 %v231
    %338 = vmatprep.subr.mxu0 0.0
    %339 = vmatpush1.msra.mxu0 0.0
    %340 = vmatprep.subr.mxu0 0.0
    %341 = vmatpush1.msra.mxu0 0.0
    %342 = vmatprep.subr.mxu0 0.0
    %343 = vmatpush1.msra.mxu0 0.0
    %344 = vmatprep.subr.mxu0 0.0
    %345 = vmatpush1.msra.mxu0 0.0
    %346 = vmatprep.subr.mxu0 0.0
    %347 = vmatpush1.msra.mxu0 0.0
    %348 = vmatprep.subr.mxu0 0.0
    %349 = vmatpush1.msra.mxu0 0.0
    %350 = vmatprep.subr.mxu0 0.0
    %351 = vmatpush1.msra.mxu0 0.0
    %352 = vmatprep.subr.mxu0 0.0
    %353 = vmatpush1.msra.mxu0 0.0
    %354 = vmatprep.subr.mxu0 0.0
    %355 = vmatpush1.msra.mxu0 0.0
    %356 = vmatprep.subr.mxu0 0.0
    %357 = vmatpush1.msra.mxu0 0.0
    %358 = vmatprep.subr.mxu0 0.0
    %359 = vmatpush1.msra.mxu0 0.0
    %360 = vmatprep.subr.mxu0 0.0
    %361 = vmatpush1.msra.mxu0 0.0
    %362 = vmatprep.subr.mxu0 0.0
    %363 = vmatpush1.msra.mxu0 0.0
    %364 = vmatprep.subr.mxu0 0.0
    %365 = vmatpush1.msra.mxu0 0.0
    %366 = vmatprep.subr.mxu0 0.0
    %367 = vmatpush1.msra.mxu0 0.0
    %368 = vmatprep.subr.mxu0 0.0
    %369 = vmatpush1.msra.mxu0 0.0
    %370 = vmatprep.mubr.f32.mxu0 0.0
    %371 = vmatmul.mubr.f32.gmra.mrb[0].mxu0 %v301
    %v372 = vpop.f32.mrb[0].mxu0
    %v373 = vadd.f32 %v305, %v372
    %v374 = vpop.f32.mrb[0].mxu0
    %375 = vdwg.mxu0
    %s376 = scalar_lea.vmem [#allocation2], 16
    %v377 = vld [vmem:[%s376] sm:$0xff]
    %378 = vmatprep.subr.mxu0 0.0
    %379 = vmatpush1.msra.mxu0 %v216
    %380 = vmatprep.subr.mxu0 0.0
    %381 = vmatpush1.msra.mxu0 %v217
    %382 = vmatprep.subr.mxu0 0.0
    %383 = vmatpush1.msra.mxu0 %v218
    %384 = vmatprep.subr.mxu0 0.0
    %385 = vmatpush1.msra.mxu0 %v219
    %386 = vmatprep.subr.mxu0 0.0
    %387 = vmatpush1.msra.mxu0 %v220
    %388 = vmatprep.subr.mxu0 0.0
    %389 = vmatpush1.msra.mxu0 %v221
    %390 = vmatprep.subr.mxu0 0.0
    %391 = vmatpush1.msra.mxu0 %v222
    %392 = vmatprep.subr.mxu0 0.0
    %393 = vmatpush1.msra.mxu0 %v223
    %394 = vmatprep.subr.mxu0 0.0
    %395 = vmatpush1.msra.mxu0 %v224
    %396 = vmatprep.subr.mxu0 0.0
    %397 = vmatpush1.msra.mxu0 %v225
    %398 = vmatprep.subr.mxu0 0.0
    %399 = vmatpush1.msra.mxu0 %v226
    %400 = vmatprep.subr.mxu0 0.0
    %401 = vmatpush1.msra.mxu0 %v227
    %402 = vmatprep.subr.mxu0 0.0
    %403 = vmatpush1.msra.mxu0 %v228
    %404 = vmatprep.subr.mxu0 0.0
    %405 = vmatpush1.msra.mxu0 %v229
    %406 = vmatprep.subr.mxu0 0.0
    %407 = vmatpush1.msra.mxu0 %v230
    %408 = vmatprep.subr.mxu0 0.0
    %409 = vmatpush1.msra.mxu0 %v231
    %410 = vmatprep.subr.mxu0 0.0
    %411 = vmatpush1.msra.mxu0 0.0
    %412 = vmatprep.subr.mxu0 0.0
    %413 = vmatpush1.msra.mxu0 0.0
    %414 = vmatprep.subr.mxu0 0.0
    %415 = vmatpush1.msra.mxu0 0.0
    %416 = vmatprep.subr.mxu0 0.0
    %417 = vmatpush1.msra.mxu0 0.0
    %418 = vmatprep.subr.mxu0 0.0
    %419 = vmatpush1.msra.mxu0 0.0
    %420 = vmatprep.subr.mxu0 0.0
    %421 = vmatpush1.msra.mxu0 0.0
    %422 = vmatprep.subr.mxu0 0.0
    %423 = vmatpush1.msra.mxu0 0.0
    %424 = vmatprep.subr.mxu0 0.0
    %425 = vmatpush1.msra.mxu0 0.0
    %426 = vmatprep.subr.mxu0 0.0
    %427 = vmatpush1.msra.mxu0 0.0
    %428 = vmatprep.subr.mxu0 0.0
    %429 = vmatpush1.msra.mxu0 0.0
    %430 = vmatprep.subr.mxu0 0.0
    %431 = vmatpush1.msra.mxu0 0.0
    %432 = vmatprep.subr.mxu0 0.0
    %433 = vmatpush1.msra.mxu0 0.0
    %434 = vmatprep.subr.mxu0 0.0
    %435 = vmatpush1.msra.mxu0 0.0
    %436 = vmatprep.subr.mxu0 0.0
    %437 = vmatpush1.msra.mxu0 0.0
    %438 = vmatprep.subr.mxu0 0.0
    %439 = vmatpush1.msra.mxu0 0.0
    %440 = vmatprep.subr.mxu0 0.0
    %441 = vmatpush1.msra.mxu0 0.0
    %442 = vmatprep.mubr.f32.mxu0 0.0
    %443 = vmatmul.mubr.f32.gmra.mrb[0].mxu0 %v373
    %v444 = vpop.f32.mrb[0].mxu0
    %v445 = vadd.f32 %v377, %v444
    %v446 = vpop.f32.mrb[0].mxu0
    %447 = vdwg.mxu0
    %s448 = scalar_lea.vmem [#allocation2], 24
    %v449 = vld [vmem:[%s448] sm:$0xff]
    %450 = vmatprep.subr.mxu0 0.0
    %451 = vmatpush1.msra.mxu0 %v216
    %452 = vmatprep.subr.mxu0 0.0
    %453 = vmatpush1.msra.mxu0 %v217
    %454 = vmatprep.subr.mxu0 0.0
    %455 = vmatpush1.msra.mxu0 %v218
    %456 = vmatprep.subr.mxu0 0.0
    %457 = vmatpush1.msra.mxu0 %v219
    %458 = vmatprep.subr.mxu0 0.0
    %459 = vmatpush1.msra.mxu0 %v220
    %460 = vmatprep.subr.mxu0 0.0
    %461 = vmatpush1.msra.mxu0 %v221
    %462 = vmatprep.subr.mxu0 0.0
    %463 = vmatpush1.msra.mxu0 %v222
    %464 = vmatprep.subr.mxu0 0.0
    %465 = vmatpush1.msra.mxu0 %v223
    %466 = vmatprep.subr.mxu0 0.0
    %467 = vmatpush1.msra.mxu0 %v224
    %468 = vmatprep.subr.mxu0 0.0
    %469 = vmatpush1.msra.mxu0 %v225
    %470 = vmatprep.subr.mxu0 0.0
    %471 = vmatpush1.msra.mxu0 %v226
    %472 = vmatprep.subr.mxu0 0.0
    %473 = vmatpush1.msra.mxu0 %v227
    %474 = vmatprep.subr.mxu0 0.0
    %475 = vmatpush1.msra.mxu0 %v228
    %476 = vmatprep.subr.mxu0 0.0
    %477 = vmatpush1.msra.mxu0 %v229
    %478 = vmatprep.subr.mxu0 0.0
    %479 = vmatpush1.msra.mxu0 %v230
    %480 = vmatprep.subr.mxu0 0.0
    %481 = vmatpush1.msra.mxu0 %v231
    %482 = vmatprep.subr.mxu0 0.0
    %483 = vmatpush1.msra.mxu0 0.0
    %484 = vmatprep.subr.mxu0 0.0
    %485 = vmatpush1.msra.mxu0 0.0
    %486 = vmatprep.subr.mxu0 0.0
    %487 = vmatpush1.msra.mxu0 0.0
    %488 = vmatprep.subr.mxu0 0.0
    %489 = vmatpush1.msra.mxu0 0.0
    %490 = vmatprep.subr.mxu0 0.0
    %491 = vmatpush1.msra.mxu0 0.0
    %492 = vmatprep.subr.mxu0 0.0
    %493 = vmatpush1.msra.mxu0 0.0
    %494 = vmatprep.subr.mxu0 0.0
    %495 = vmatpush1.msra.mxu0 0.0
    %496 = vmatprep.subr.mxu0 0.0
    %497 = vmatpush1.msra.mxu0 0.0
    %498 = vmatprep.subr.mxu0 0.0
    %499 = vmatpush1.msra.mxu0 0.0
    %500 = vmatprep.subr.mxu0 0.0
    %501 = vmatpush1.msra.mxu0 0.0
    %502 = vmatprep.subr.mxu0 0.0
    %503 = vmatpush1.msra.mxu0 0.0
    %504 = vmatprep.subr.mxu0 0.0
    %505 = vmatpush1.msra.mxu0 0.0
    %506 = vmatprep.subr.mxu0 0.0
    %507 = vmatpush1.msra.mxu0 0.0
    %508 = vmatprep.subr.mxu0 0.0
    %509 = vmatpush1.msra.mxu0 0.0
    %510 = vmatprep.subr.mxu0 0.0
    %511 = vmatpush1.msra.mxu0 0.0
    %512 = vmatprep.subr.mxu0 0.0
    %513 = vmatpush1.msra.mxu0 0.0
    %514 = vmatprep.mubr.f32.mxu0 0.0
    %515 = vmatmul.mubr.f32.gmra.mrb[0].mxu0 %v445
    %v516 = vpop.f32.mrb[0].mxu0
    %v517 = vadd.f32 %v449, %v516
    %v518 = vpop.f32.mrb[0].mxu0
    %519 = vdwg.mxu0
    %s520 = scalar_lea.vmem [#allocation2], 32
    %v521 = vld [vmem:[%s520] sm:$0xff]
    %522 = vmatprep.subr.mxu0 0.0
    %523 = vmatpush1.msra.mxu0 %v216
    %524 = vmatprep.subr.mxu0 0.0
    %525 = vmatpush1.msra.mxu0 %v217
    %526 = vmatprep.subr.mxu0 0.0
    %527 = vmatpush1.msra.mxu0 %v218
    %528 = vmatprep.subr.mxu0 0.0
    %529 = vmatpush1.msra.mxu0 %v219
    %530 = vmatprep.subr.mxu0 0.0
    %531 = vmatpush1.msra.mxu0 %v220
    %532 = vmatprep.subr.mxu0 0.0
    %533 = vmatpush1.msra.mxu0 %v221
    %534 = vmatprep.subr.mxu0 0.0
    %535 = vmatpush1.msra.mxu0 %v222
    %536 = vmatprep.subr.mxu0 0.0
    %537 = vmatpush1.msra.mxu0 %v223
    %538 = vmatprep.subr.mxu0 0.0
    %539 = vmatpush1.msra.mxu0 %v224
    %540 = vmatprep.subr.mxu0 0.0
    %541 = vmatpush1.msra.mxu0 %v225
    %542 = vmatprep.subr.mxu0 0.0
    %543 = vmatpush1.msra.mxu0 %v226
    %544 = vmatprep.subr.mxu0 0.0
    %545 = vmatpush1.msra.mxu0 %v227
    %546 = vmatprep.subr.mxu0 0.0
    %547 = vmatpush1.msra.mxu0 %v228
    %548 = vmatprep.subr.mxu0 0.0
    %549 = vmatpush1.msra.mxu0 %v229
    %550 = vmatprep.subr.mxu0 0.0
    %551 = vmatpush1.msra.mxu0 %v230
    %552 = vmatprep.subr.mxu0 0.0
    %553 = vmatpush1.msra.mxu0 %v231
    %554 = vmatprep.subr.mxu0 0.0
    %555 = vmatpush1.msra.mxu0 0.0
    %556 = vmatprep.subr.mxu0 0.0
    %557 = vmatpush1.msra.mxu0 0.0
    %558 = vmatprep.subr.mxu0 0.0
    %559 = vmatpush1.msra.mxu0 0.0
    %560 = vmatprep.subr.mxu0 0.0
    %561 = vmatpush1.msra.mxu0 0.0
    %562 = vmatprep.subr.mxu0 0.0
    %563 = vmatpush1.msra.mxu0 0.0
    %564 = vmatprep.subr.mxu0 0.0
    %565 = vmatpush1.msra.mxu0 0.0
    %566 = vmatprep.subr.mxu0 0.0
    %567 = vmatpush1.msra.mxu0 0.0
    %568 = vmatprep.subr.mxu0 0.0
    %569 = vmatpush1.msra.mxu0 0.0
    %570 = vmatprep.subr.mxu0 0.0
    %571 = vmatpush1.msra.mxu0 0.0
    %572 = vmatprep.subr.mxu0 0.0
    %573 = vmatpush1.msra.mxu0 0.0
    %574 = vmatprep.subr.mxu0 0.0
    %575 = vmatpush1.msra.mxu0 0.0
    %576 = vmatprep.subr.mxu0 0.0
    %577 = vmatpush1.msra.mxu0 0.0
    %578 = vmatprep.subr.mxu0 0.0
    %579 = vmatpush1.msra.mxu0 0.0
    %580 = vmatprep.subr.mxu0 0.0
    %581 = vmatpush1.msra.mxu0 0.0
    %582 = vmatprep.subr.mxu0 0.0
    %583 = vmatpush1.msra.mxu0 0.0
    %584 = vmatprep.subr.mxu0 0.0
    %585 = vmatpush1.msra.mxu0 0.0
    %586 = vmatprep.mubr.f32.mxu0 0.0
    %587 = vmatmul.mubr.f32.gmra.mrb[0].mxu0 %v517
    %v588 = vpop.f32.mrb[0].mxu0
    %v589 = vadd.f32 %v521, %v588
    %v590 = vpop.f32.mrb[0].mxu0
    %591 = vdwg.mxu0
    %s592 = scalar_lea.vmem [#allocation2], 40
    %v593 = vld [vmem:[%s592] sm:$0xff]
    %594 = vmatprep.subr.mxu0 0.0
    %595 = vmatpush1.msra.mxu0 %v216
    %596 = vmatprep.subr.mxu0 0.0
    %597 = vmatpush1.msra.mxu0 %v217
    %598 = vmatprep.subr.mxu0 0.0
    %599 = vmatpush1.msra.mxu0 %v218
    %600 = vmatprep.subr.mxu0 0.0
    %601 = vmatpush1.msra.mxu0 %v219
    %602 = vmatprep.subr.mxu0 0.0
    %603 = vmatpush1.msra.mxu0 %v220
    %604 = vmatprep.subr.mxu0 0.0
    %605 = vmatpush1.msra.mxu0 %v221
    %606 = vmatprep.subr.mxu0 0.0
    %607 = vmatpush1.msra.mxu0 %v222
    %608 = vmatprep.subr.mxu0 0.0
    %609 = vmatpush1.msra.mxu0 %v223
    %610 = vmatprep.subr.mxu0 0.0
    %611 = vmatpush1.msra.mxu0 %v224
    %612 = vmatprep.subr.mxu0 0.0
    %613 = vmatpush1.msra.mxu0 %v225
    %614 = vmatprep.subr.mxu0 0.0
    %615 = vmatpush1.msra.mxu0 %v226
    %616 = vmatprep.subr.mxu0 0.0
    %617 = vmatpush1.msra.mxu0 %v227
    %618 = vmatprep.subr.mxu0 0.0
    %619 = vmatpush1.msra.mxu0 %v228
    %620 = vmatprep.subr.mxu0 0.0
    %621 = vmatpush1.msra.mxu0 %v229
    %622 = vmatprep.subr.mxu0 0.0
    %623 = vmatpush1.msra.mxu0 %v230
    %624 = vmatprep.subr.mxu0 0.0
    %625 = vmatpush1.msra.mxu0 %v231
    %626 = vmatprep.subr.mxu0 0.0
    %627 = vmatpush1.msra.mxu0 0.0
    %628 = vmatprep.subr.mxu0 0.0
    %629 = vmatpush1.msra.mxu0 0.0
    %630 = vmatprep.subr.mxu0 0.0
    %631 = vmatpush1.msra.mxu0 0.0
    %632 = vmatprep.subr.mxu0 0.0
    %633 = vmatpush1.msra.mxu0 0.0
    %634 = vmatprep.subr.mxu0 0.0
    %635 = vmatpush1.msra.mxu0 0.0
    %636 = vmatprep.subr.mxu0 0.0
    %637 = vmatpush1.msra.mxu0 0.0
    %638 = vmatprep.subr.mxu0 0.0
    %639 = vmatpush1.msra.mxu0 0.0
    %640 = vmatprep.subr.mxu0 0.0
    %641 = vmatpush1.msra.mxu0 0.0
    %642 = vmatprep.subr.mxu0 0.0
    %643 = vmatpush1.msra.mxu0 0.0
    %644 = vmatprep.subr.mxu0 0.0
    %645 = vmatpush1.msra.mxu0 0.0
    %646 = vmatprep.subr.mxu0 0.0
    %647 = vmatpush1.msra.mxu0 0.0
    %648 = vmatprep.subr.mxu0 0.0
    %649 = vmatpush1.msra.mxu0 0.0
    %650 = vmatprep.subr.mxu0 0.0
    %651 = vmatpush1.msra.mxu0 0.0
    %652 = vmatprep.subr.mxu0 0.0
    %653 = vmatpush1.msra.mxu0 0.0
    %654 = vmatprep.subr.mxu0 0.0
    %655 = vmatpush1.msra.mxu0 0.0
    %656 = vmatprep.subr.mxu0 0.0
    %657 = vmatpush1.msra.mxu0 0.0
    %658 = vmatprep.mubr.f32.mxu0 0.0
    %659 = vmatmul.mubr.f32.gmra.mrb[0].mxu0 %v589
    %v660 = vpop.f32.mrb[0].mxu0
    %v661 = vadd.f32 %v593, %v660
    %v662 = vpop.f32.mrb[0].mxu0
    %663 = vdwg.mxu0
    %s664 = scalar_lea.vmem [#allocation2], 48
    %v665 = vld [vmem:[%s664] sm:$0xff]
    %666 = vmatprep.subr.mxu0 0.0
    %667 = vmatpush1.msra.mxu0 %v216
    %668 = vmatprep.subr.mxu0 0.0
    %669 = vmatpush1.msra.mxu0 %v217
    %670 = vmatprep.subr.mxu0 0.0
    %671 = vmatpush1.msra.mxu0 %v218
    %672 = vmatprep.subr.mxu0 0.0
    %673 = vmatpush1.msra.mxu0 %v219
    %674 = vmatprep.subr.mxu0 0.0
    %675 = vmatpush1.msra.mxu0 %v220
    %676 = vmatprep.subr.mxu0 0.0
    %677 = vmatpush1.msra.mxu0 %v221
    %678 = vmatprep.subr.mxu0 0.0
    %679 = vmatpush1.msra.mxu0 %v222
    %680 = vmatprep.subr.mxu0 0.0
    %681 = vmatpush1.msra.mxu0 %v223
    %682 = vmatprep.subr.mxu0 0.0
    %683 = vmatpush1.msra.mxu0 %v224
    %684 = vmatprep.subr.mxu0 0.0
    %685 = vmatpush1.msra.mxu0 %v225
    %686 = vmatprep.subr.mxu0 0.0
    %687 = vmatpush1.msra.mxu0 %v226
    %688 = vmatprep.subr.mxu0 0.0
    %689 = vmatpush1.msra.mxu0 %v227
    %690 = vmatprep.subr.mxu0 0.0
    %691 = vmatpush1.msra.mxu0 %v228
    %692 = vmatprep.subr.mxu0 0.0
    %693 = vmatpush1.msra.mxu0 %v229
    %694 = vmatprep.subr.mxu0 0.0
    %695 = vmatpush1.msra.mxu0 %v230
    %696 = vmatprep.subr.mxu0 0.0
    %697 = vmatpush1.msra.mxu0 %v231
    %698 = vmatprep.subr.mxu0 0.0
    %699 = vmatpush1.msra.mxu0 0.0
    %700 = vmatprep.subr.mxu0 0.0
    %701 = vmatpush1.msra.mxu0 0.0
    %702 = vmatprep.subr.mxu0 0.0
    %703 = vmatpush1.msra.mxu0 0.0
    %704 = vmatprep.subr.mxu0 0.0
    %705 = vmatpush1.msra.mxu0 0.0
    %706 = vmatprep.subr.mxu0 0.0
    %707 = vmatpush1.msra.mxu0 0.0
    %708 = vmatprep.subr.mxu0 0.0
    %709 = vmatpush1.msra.mxu0 0.0
    %710 = vmatprep.subr.mxu0 0.0
    %711 = vmatpush1.msra.mxu0 0.0
    %712 = vmatprep.subr.mxu0 0.0
    %713 = vmatpush1.msra.mxu0 0.0
    %714 = vmatprep.subr.mxu0 0.0
    %715 = vmatpush1.msra.mxu0 0.0
    %716 = vmatprep.subr.mxu0 0.0
    %717 = vmatpush1.msra.mxu0 0.0
    %718 = vmatprep.subr.mxu0 0.0
    %719 = vmatpush1.msra.mxu0 0.0
    %720 = vmatprep.subr.mxu0 0.0
    %721 = vmatpush1.msra.mxu0 0.0
    %722 = vmatprep.subr.mxu0 0.0
    %723 = vmatpush1.msra.mxu0 0.0
    %724 = vmatprep.subr.mxu0 0.0
    %725 = vmatpush1.msra.mxu0 0.0
    %726 = vmatprep.subr.mxu0 0.0
    %727 = vmatpush1.msra.mxu0 0.0
    %728 = vmatprep.subr.mxu0 0.0
    %729 = vmatpush1.msra.mxu0 0.0
    %730 = vmatprep.mubr.f32.mxu0 0.0
    %731 = vmatmul.mubr.f32.gmra.mrb[0].mxu0 %v661
    %v732 = vpop.f32.mrb[0].mxu0
    %v733 = vadd.f32 %v665, %v732
    %v734 = vpop.f32.mrb[0].mxu0
    %735 = vdwg.mxu0
    %s736 = scalar_lea.vmem [#allocation2], 56
    %v737 = vld [vmem:[%s736] sm:$0xff]
    %738 = vmatprep.subr.mxu0 0.0
    %739 = vmatpush1.msra.mxu0 %v216
    %740 = vmatprep.subr.mxu0 0.0
    %741 = vmatpush1.msra.mxu0 %v217
    %742 = vmatprep.subr.mxu0 0.0
    %743 = vmatpush1.msra.mxu0 %v218
    %744 = vmatprep.subr.mxu0 0.0
    %745 = vmatpush1.msra.mxu0 %v219
    %746 = vmatprep.subr.mxu0 0.0
    %747 = vmatpush1.msra.mxu0 %v220
    %748 = vmatprep.subr.mxu0 0.0
    %749 = vmatpush1.msra.mxu0 %v221
    %750 = vmatprep.subr.mxu0 0.0
    %751 = vmatpush1.msra.mxu0 %v222
    %752 = vmatprep.subr.mxu0 0.0
    %753 = vmatpush1.msra.mxu0 %v223
    %754 = vmatprep.subr.mxu0 0.0
    %755 = vmatpush1.msra.mxu0 %v224
    %756 = vmatprep.subr.mxu0 0.0
    %757 = vmatpush1.msra.mxu0 %v225
    %758 = vmatprep.subr.mxu0 0.0
    %759 = vmatpush1.msra.mxu0 %v226
    %760 = vmatprep.subr.mxu0 0.0
    %761 = vmatpush1.msra.mxu0 %v227
    %762 = vmatprep.subr.mxu0 0.0
    %763 = vmatpush1.msra.mxu0 %v228
    %764 = vmatprep.subr.mxu0 0.0
    %765 = vmatpush1.msra.mxu0 %v229
    %766 = vmatprep.subr.mxu0 0.0
    %767 = vmatpush1.msra.mxu0 %v230
    %768 = vmatprep.subr.mxu0 0.0
    %769 = vmatpush1.msra.mxu0 %v231
    %770 = vmatprep.subr.mxu0 0.0
    %771 = vmatpush1.msra.mxu0 0.0
    %772 = vmatprep.subr.mxu0 0.0
    %773 = vmatpush1.msra.mxu0 0.0
    %774 = vmatprep.subr.mxu0 0.0
    %775 = vmatpush1.msra.mxu0 0.0
    %776 = vmatprep.subr.mxu0 0.0
    %777 = vmatpush1.msra.mxu0 0.0
    %778 = vmatprep.subr.mxu0 0.0
    %779 = vmatpush1.msra.mxu0 0.0
    %780 = vmatprep.subr.mxu0 0.0
    %781 = vmatpush1.msra.mxu0 0.0
    %782 = vmatprep.subr.mxu0 0.0
    %783 = vmatpush1.msra.mxu0 0.0
    %784 = vmatprep.subr.mxu0 0.0
    %785 = vmatpush1.msra.mxu0 0.0
    %786 = vmatprep.subr.mxu0 0.0
    %787 = vmatpush1.msra.mxu0 0.0
    %788 = vmatprep.subr.mxu0 0.0
    %789 = vmatpush1.msra.mxu0 0.0
    %790 = vmatprep.subr.mxu0 0.0
    %791 = vmatpush1.msra.mxu0 0.0
    %792 = vmatprep.subr.mxu0 0.0
    %793 = vmatpush1.msra.mxu0 0.0
    %794 = vmatprep.subr.mxu0 0.0
    %795 = vmatpush1.msra.mxu0 0.0
    %796 = vmatprep.subr.mxu0 0.0
    %797 = vmatpush1.msra.mxu0 0.0
    %798 = vmatprep.subr.mxu0 0.0
    %799 = vmatpush1.msra.mxu0 0.0
    %800 = vmatprep.subr.mxu0 0.0
    %801 = vmatpush1.msra.mxu0 0.0
    %802 = vmatprep.mubr.f32.mxu0 0.0
    %803 = vmatmul.mubr.f32.gmra.mrb[0].mxu0 %v733
    %v804 = vpop.f32.mrb[0].mxu0
    %v805 = vadd.f32 %v737, %v804
    %v806 = vpop.f32.mrb[0].mxu0
    %807 = vdwg.mxu0
    %808 = vst [vmem:[#allocation3] sm:$0xff] %v805
    // Predicated region
    $region42: #{tpu_custom_call.1} parent=1 // pred_check
      %p809 = pneg %p55
    $region43: #{tpu_custom_call.1} parent=1 // pred_check_branch
      %811 = sbr.rel (%p809) target = $region45
    $region44: #{tpu_custom_call.1} parent=1 // pred_region
      %v812 = vld [vmem:[#allocation7] sm:$0xff]
      %v813 = vld [vmem:[#allocation7 + $0x8] sm:$0xff]
      %v814 = vld [vmem:[#allocation7 + $0x10] sm:$0xff]
      %v815 = vld [vmem:[#allocation7 + $0x18] sm:$0xff]
      %v816 = vld [vmem:[#allocation7 + $0x20] sm:$0xff]
      %v817 = vld [vmem:[#allocation7 + $0x28] sm:$0xff]
      %v818 = vld [vmem:[#allocation7 + $0x30] sm:$0xff]
      %v819 = vld [vmem:[#allocation7 + $0x38] sm:$0xff]
      %v820 = vld [vmem:[#allocation7 + $0x40] sm:$0xff]
      %v821 = vld [vmem:[#allocation7 + $0x48] sm:$0xff]
      %v822 = vld [vmem:[#allocation7 + $0x50] sm:$0xff]
      %v823 = vld [vmem:[#allocation7 + $0x58] sm:$0xff]
      %v824 = vld [vmem:[#allocation7 + $0x60] sm:$0xff]
      %v825 = vld [vmem:[#allocation7 + $0x68] sm:$0xff]
      %v826 = vld [vmem:[#allocation7 + $0x70] sm:$0xff]
      %v827 = vld [vmem:[#allocation7 + $0x78] sm:$0xff]
      %v828 = vld [vmem:[%s5] sm:$0x1]
      %v830 = vlaneseq
      %v831 = vshrl.u32 %v830, 7
      %v832 = vsub.s32 0, %v831
      %v833 = vrot.slane %v828, %v832
      %835 = vmatprep.subr.mxu0 0.0
      %836 = vmatpush1.msra.mxu0 %v812
      %837 = vmatprep.subr.mxu0 0.0
      %838 = vmatpush1.msra.mxu0 %v813
      %839 = vmatprep.subr.mxu0 0.0
      %840 = vmatpush1.msra.mxu0 %v814
      %841 = vmatprep.subr.mxu0 0.0
      %842 = vmatpush1.msra.mxu0 %v815
      %843 = vmatprep.subr.mxu0 0.0
      %844 = vmatpush1.msra.mxu0 %v816
      %845 = vmatprep.subr.mxu0 0.0
      %846 = vmatpush1.msra.mxu0 %v817
      %847 = vmatprep.subr.mxu0 0.0
      %848 = vmatpush1.msra.mxu0 %v818
      %849 = vmatprep.subr.mxu0 0.0
      %850 = vmatpush1.msra.mxu0 %v819
      %851 = vmatprep.subr.mxu0 0.0
      %852 = vmatpush1.msra.mxu0 %v820
      %853 = vmatprep.subr.mxu0 0.0
      %854 = vmatpush1.msra.mxu0 %v821
      %855 = vmatprep.subr.mxu0 0.0
      %856 = vmatpush1.msra.mxu0 %v822
      %857 = vmatprep.subr.mxu0 0.0
      %858 = vmatpush1.msra.mxu0 %v823
      %859 = vmatprep.subr.mxu0 0.0
      %860 = vmatpush1.msra.mxu0 %v824
      %861 = vmatprep.subr.mxu0 0.0
      %862 = vmatpush1.msra.mxu0 %v825
      %863 = vmatprep.subr.mxu0 0.0
      %864 = vmatpush1.msra.mxu0 %v826
      %865 = vmatprep.subr.mxu0 0.0
      %866 = vmatpush1.msra.mxu0 %v827
      %867 = vmatprep.subr.mxu0 0.0
      %868 = vmatpush1.msra.mxu0 0.0
      %869 = vmatprep.subr.mxu0 0.0
      %870 = vmatpush1.msra.mxu0 0.0
      %871 = vmatprep.subr.mxu0 0.0
      %872 = vmatpush1.msra.mxu0 0.0
      %873 = vmatprep.subr.mxu0 0.0
      %874 = vmatpush1.msra.mxu0 0.0
      %875 = vmatprep.subr.mxu0 0.0
      %876 = vmatpush1.msra.mxu0 0.0
      %877 = vmatprep.subr.mxu0 0.0
      %878 = vmatpush1.msra.mxu0 0.0
      %879 = vmatprep.subr.mxu0 0.0
      %880 = vmatpush1.msra.mxu0 0.0
      %881 = vmatprep.subr.mxu0 0.0
      %882 = vmatpush1.msra.mxu0 0.0
      %883 = vmatprep.subr.mxu0 0.0
      %884 = vmatpush1.msra.mxu0 0.0
      %885 = vmatprep.subr.mxu0 0.0
      %886 = vmatpush1.msra.mxu0 0.0
      %887 = vmatprep.subr.mxu0 0.0
      %888 = vmatpush1.msra.mxu0 0.0
      %889 = vmatprep.subr.mxu0 0.0
      %890 = vmatpush1.msra.mxu0 0.0
      %891 = vmatprep.subr.mxu0 0.0
      %892 = vmatpush1.msra.mxu0 0.0
      %893 = vmatprep.subr.mxu0 0.0
      %894 = vmatpush1.msra.mxu0 0.0
      %895 = vmatprep.subr.mxu0 0.0
      %896 = vmatpush1.msra.mxu0 0.0
      %897 = vmatprep.subr.mxu0 0.0
      %898 = vmatpush1.msra.mxu0 0.0
      %899 = vmatprep.mubr.f32.mxu0 0.0
      %900 = vmatmul.mubr.f32.gmra.mrb[0].mxu0 %v805
      %v901 = vpop.f32.mrb[0].mxu0
      %v902 = vadd.f32 %v833, %v901
      %v903 = vpop.f32.mrb[0].mxu0
      %904 = vdwg.mxu0
      %905 = vst [vmem:[#allocation9] sm:$0xff] %v902
    $region45: #{tpu_custom_call.1} parent=1 // pred_fallthru
      _
    // Predicated region
    $region46: #{tpu_custom_call.1} parent=1 // pred_check
      _
    $region47: #{tpu_custom_call.1} parent=1 // pred_check_branch
      %907 = sbr.rel (0) target = $region49
    $region48: #{tpu_custom_call.1} parent=1 // pred_region
      %s909 = ssub.s32 128, 128
      %910 = vsyncadd [#allocation6], %s909
      %s912 = sshll.u32 [#allocation9], 4
      %s913 = int_to_ptr.vmem [resolvable:$true] %s912
      %915 = dma.vmem_to_hbm [thread:$0]  %s913, 128, %s7, [#allocation6]
    $region49: #{tpu_custom_call.1} parent=1 // pred_fallthru
      _
    // Predicated region
    $region50: #{tpu_custom_call.1} parent=1 // pred_check
      _
    $region51: #{tpu_custom_call.1} parent=1 // pred_check_branch
      %917 = sbr.rel (0) target = $region53
    $region52: #{tpu_custom_call.1} parent=1 // pred_region
      %918 = dma.done [#allocation6], 128
    $region53: #{tpu_custom_call.1} parent=1 // pred_fallthru
      _
    %919 = vsyncpa [#allocation5], 1
    %920 = vsyncpa [#allocation8], 1
    %921 = vsyncpa [#allocation6], 1

</llo_original>
